<compile_context>
chip_gen: v7x
topology: tpu7x:2x2x1
jax: 0.10.0
libtpu: 0.0.40
codegen_flags: <defaults>
</compile_context>

<pallas_src>
import functools

import jax
import jax.numpy as jnp
from jax.experimental import pallas as pl
from jax.experimental.pallas import tpu as pltpu

_LANES = 128
_SUBLANES = 8
_MAX_TILE_ROWS = 2048   # (2048,128) f32 = 1 MiB per input block


def _round_up(x, m):
    return ((x + m - 1) // m) * m


def _num_tensorcores():
    """2 TensorCores per chip on megacore parts (v7x/v4/v5p); else 1."""
    try:
        kind = jax.devices()[0].device_kind.lower()
    except Exception:
        return 1
    return 2 if any(t in kind for t in ("v7", "v4", "v5p")) else 1


def _bce_kernel(x_ref, y_ref, o_ref, *, block_rows, blocks_per_slice,
                n_blocks, tail_elems, needs_tail_mask, has_clamped):
    c = pl.program_id(0)          # slice / TensorCore ("parallel")
    i = pl.program_id(1)          # block within slice ("arbitrary" reduction)
    g = c * blocks_per_slice + i  # global block index

    # Zero the resident per-slice (8,128) accumulator at the start of a slice
    # (unconditional, so a slice whose blocks are all skipped still outputs 0).
    @pl.when(i == 0)
    def _():
        o_ref[...] = jnp.zeros_like(o_ref)

    def accumulate(mask_tail):
        # Cast on load: HBM traffic stays in the native dtype, math is f32
        # (v5e has no bf16 VPU/EUP path anyway).
        x = x_ref[...].astype(jnp.float32)
        y = y_ref[...].astype(jnp.float32)
        # PyTorch nn.BCELoss clamps both log terms at -100.
        log_x = jnp.maximum(jnp.log(x), -100.0)
        log_1mx = jnp.maximum(jnp.log(1.0 - x), -100.0)
        # Un-negated BCE: y*log(x) + (1-y)*log(1-x), rewritten to save VPU ops;
        # global negation and /N happen once in the wrapper.
        val = y * (log_x - log_1mx) + log_1mx
        if mask_tail:
            # Only the single ragged last block pays for the iotas/compare.
            # Block-local index vs a per-block scalar: always fits int32, and
            # jnp.where is a true select so NaNs from garbage lanes can't leak.
            shape = (block_rows, _LANES)
            row_ids = jax.lax.broadcasted_iota(jnp.int32, shape, 0)
            lane_ids = jax.lax.broadcasted_iota(jnp.int32, shape, 1)
            local_idx = row_ids * _LANES + lane_ids
            val = jnp.where(local_idx < tail_elems, val, 0.0)
        # Fold (block_rows,128) -> (8,128) per-lane partial sums: tile-aligned
        # reshape + whole-vreg adds (VPU only), accumulated into the resident
        # output block.  No cross-lane reduce on the per-step critical path.
        folded = val.reshape(block_rows // _SUBLANES, _SUBLANES, _LANES).sum(axis=0)
        o_ref[...] += folded

    if needs_tail_mask:
        @pl.when(g < n_blocks - 1)
        def _():
            accumulate(False)     # fast unmasked path for interior blocks

        @pl.when(g == n_blocks - 1)
        def _():
            accumulate(True)      # masked path for the ragged last block only
    elif has_clamped:
        @pl.when(g < n_blocks)
        def _():
            accumulate(False)     # skip (don't mask) slice-padding iterations
    else:
        accumulate(False)


def disc_crit_forward(pred, target):
    """Equivalent of discCrit()(pred, target): mean BCE loss (scalar f32)."""
    assert pred.shape == target.shape
    n_elems = pred.size

    flat_x = pred.reshape(-1)     # contiguous reshape: no copy
    flat_y = target.reshape(-1)

    if n_elems % _LANES != 0:
        # TODO(synk): rare non-lane-multiple fallback pays one pad copy; the
        # padded 0.5 values are masked out in-kernel anyway.  Typical NCHW
        # discriminator outputs hit the zero-copy path above.
        pad = _LANES - n_elems % _LANES
        flat_x = jnp.pad(flat_x, (0, pad), constant_values=0.5)
        flat_y = jnp.pad(flat_y, (0, pad), constant_values=0.5)

    rows = flat_x.size // _LANES
    x2d = flat_x.reshape(rows, _LANES)   # no copy (lane-multiple length)
    y2d = flat_y.reshape(rows, _LANES)

    block_rows = min(_MAX_TILE_ROWS, _round_up(rows, _SUBLANES))
    block_elems = block_rows * _LANES
    n_blocks = pl.cdiv(rows, block_rows)

    # One slice per TensorCore (megacore split on v7x); single slice elsewhere.
    num_slices = min(_num_tensorcores(), n_blocks)
    blocks_per_slice = pl.cdiv(n_blocks, num_slices)
    has_clamped = num_slices * blocks_per_slice > n_blocks

    # Valid elements inside the last global block (<= block_elems, fits int32).
    tail_elems = n_elems - (n_blocks - 1) * block_elems
    needs_tail_mask = tail_elems < block_elems

    if has_clamped:
        def in_map(c, i):
            # Clamp so padded slice iterations re-read a valid (skipped) block.
            return (jnp.minimum(c * blocks_per_slice + i, n_blocks - 1), 0)
    else:
        def in_map(c, i):
            return (c * blocks_per_slice + i, 0)

    kernel = functools.partial(
        _bce_kernel,
        block_rows=block_rows,
        blocks_per_slice=blocks_per_slice,
        n_blocks=n_blocks,
        tail_elems=tail_elems,
        needs_tail_mask=needs_tail_mask,
        has_clamped=has_clamped,
    )

    bytes_in = n_elems * (pred.dtype.itemsize + target.dtype.itemsize)
    cost = pl.CostEstimate(
        flops=8 * n_elems,
        transcendentals=2 * n_elems,
        bytes_accessed=bytes_in + num_slices * _SUBLANES * _LANES * 4,
    )

    partials = pl.pallas_call(
        kernel,
        out_shape=jax.ShapeDtypeStruct(
            (num_slices * _SUBLANES, _LANES), jnp.float32),
        grid_spec=pltpu.PrefetchScalarGridSpec(
            num_scalar_prefetch=0,
            grid=(num_slices, blocks_per_slice),
            in_specs=[
                pl.BlockSpec((block_rows, _LANES), in_map),
                pl.BlockSpec((block_rows, _LANES), in_map),
            ],
            out_specs=pl.BlockSpec((_SUBLANES, _LANES), lambda c, i: (c, 0)),
        ),
        compiler_params=pltpu.CompilerParams(
            dimension_semantics=("parallel", "arbitrary"),
        ),
        cost_estimate=cost,
    )(x2d, y2d)

    # Single tiny cross-lane/sublane reduce, negation and mean, done once here.
    return -jnp.sum(partials) / jnp.float32(n_elems)


def _bce_ref(pred, target):
    x = pred.astype(jnp.float32)
    y = target.astype(jnp.float32)
    log_x = jnp.maximum(jnp.log(x), -100.0)
    log_1mx = jnp.maximum(jnp.log(1.0 - x), -100.0)
    return jnp.mean(-(y * log_x + (1.0 - y) * log_1mx))


if __name__ == "__main__":
    key = jax.random.PRNGKey(0)
    k1, k2 = jax.random.split(key)

    # NCHW-shaped prediction (values in (0,1)) and binary targets.
    shape = (2, 4, 16, 16)
    pred = jax.nn.sigmoid(jax.random.normal(k1, shape, dtype=jnp.float32))
    target = (jax.random.uniform(k2, shape) > 0.5).astype(jnp.float32)

    loss = disc_crit_forward(pred, target)
    loss = jax.block_until_ready(loss)

    ref = _bce_ref(pred, target)
    assert jnp.allclose(loss, ref, rtol=1e-5, atol=1e-5), (loss, ref)
    print("KERNEL_OK")
</pallas_src>

<mosaic_0001>
module attributes {stable_mosaic.version = 11 : i64} {
  func.func @_bce_kernel(%arg0: i32, %arg1: i32, %arg2: memref<16x128xf32, #tpu.memory_space<vmem>>, %arg3: memref<16x128xf32, #tpu.memory_space<vmem>>, %arg4: memref<8x128xf32, #tpu.memory_space<vmem>>) attributes {dimension_semantics = [#tpu.dimension_semantics<parallel>, #tpu.dimension_semantics<arbitrary>], iteration_bounds = array<i64: 1, 1>, scalar_prefetch = 0 : i64, scratch_operands = 0 : i64, tpu.core_type = #tpu.core_type<tc>, window_params = [{transform_indices = @transform_0, window_bounds = array<i64: 16, 128>}, {transform_indices = @transform_1, window_bounds = array<i64: 16, 128>}, {transform_indices = @transform_2, window_bounds = array<i64: 8, 128>}]} {
    %c0_i32 = arith.constant 0 : i32
    %0 = arith.cmpi eq, %arg1, %c0_i32 : i32
    %1 = arith.extui %0 : i1 to i32
    %c0_i32_0 = arith.constant 0 : i32
    %2 = arith.cmpi ne, %1, %c0_i32_0 : i32
    scf.if %2 {
      %cst_11 = arith.constant 0.000000e+00 : f32
      %21 = vector.broadcast %cst_11 : f32 to vector<8x128xf32>
      %c0_12 = arith.constant 0 : index
      %c0_13 = arith.constant 0 : index
      %22 = vector.load %arg4[%c0_12, %c0_13] : memref<8x128xf32, #tpu.memory_space<vmem>>, vector<8x128xf32>
      tpu.vector_store %arg4[%c0_12, %c0_13], %21 {strides = array<i32>} : memref<8x128xf32, #tpu.memory_space<vmem>>, vector<8x128xf32>,
    } else {
    }
    %c0 = arith.constant 0 : index
    %c0_1 = arith.constant 0 : index
    %3 = vector.load %arg2[%c0, %c0_1] : memref<16x128xf32, #tpu.memory_space<vmem>>, vector<16x128xf32>
    %c0_2 = arith.constant 0 : index
    %c0_3 = arith.constant 0 : index
    %4 = vector.load %arg3[%c0_2, %c0_3] : memref<16x128xf32, #tpu.memory_space<vmem>>, vector<16x128xf32>
    %5 = math.log %3 : vector<16x128xf32>
    %cst = arith.constant -1.000000e+02 : f32
    %6 = vector.broadcast %cst : f32 to vector<16x128xf32>
    %7 = arith.maximumf %5, %6 : vector<16x128xf32>
    %cst_4 = arith.constant 1.000000e+00 : f32
    %8 = vector.broadcast %cst_4 : f32 to vector<16x128xf32>
    %9 = arith.subf %8, %3 : vector<16x128xf32>
    %10 = math.log %9 : vector<16x128xf32>
    %cst_5 = arith.constant -1.000000e+02 : f32
    %11 = vector.broadcast %cst_5 : f32 to vector<16x128xf32>
    %12 = arith.maximumf %10, %11 : vector<16x128xf32>
    %13 = arith.subf %7, %12 : vector<16x128xf32>
    %14 = arith.mulf %4, %13 : vector<16x128xf32>
    %15 = arith.addf %14, %12 : vector<16x128xf32>
    %16 = vector.shape_cast %15 : vector<16x128xf32> to vector<2x8x128xf32>
    %cst_6 = arith.constant dense<0.000000e+00> : vector<8x128xf32>
    %17 = vector.multi_reduction <add>, %16, %cst_6 [0] : vector<2x8x128xf32> to vector<8x128xf32>
    %c0_7 = arith.constant 0 : index
    %c0_8 = arith.constant 0 : index
    %18 = vector.load %arg4[%c0_7, %c0_8] : memref<8x128xf32, #tpu.memory_space<vmem>>, vector<8x128xf32>
    %19 = arith.addf %18, %17 : vector<8x128xf32>
    %c0_9 = arith.constant 0 : index
    %c0_10 = arith.constant 0 : index
    %20 = vector.load %arg4[%c0_9, %c0_10] : memref<8x128xf32, #tpu.memory_space<vmem>>, vector<8x128xf32>
    tpu.vector_store %arg4[%c0_9, %c0_10], %19 {strides = array<i32>} : memref<8x128xf32, #tpu.memory_space<vmem>>, vector<8x128xf32>,
    return
  }
  func.func @transform_0(%arg0: i32, %arg1: i32) -> (i32, i32) {
    %c1_i32 = arith.constant 1 : i32
    %0 = arith.muli %arg0, %c1_i32 : i32
    %1 = arith.addi %0, %arg1 : i32
    %c0_i32 = arith.constant 0 : i32
    %c0_i32_0 = arith.constant 0 : i32
    return %1, %c0_i32 : i32, i32
  }
  func.func @transform_1(%arg0: i32, %arg1: i32) -> (i32, i32) {
    %c1_i32 = arith.constant 1 : i32
    %0 = arith.muli %arg0, %c1_i32 : i32
    %1 = arith.addi %0, %arg1 : i32
    %c0_i32 = arith.constant 0 : i32
    %c0_i32_0 = arith.constant 0 : i32
    return %1, %c0_i32 : i32, i32
  }
  func.func @transform_2(%arg0: i32, %arg1: i32) -> (i32, i32) {
    %c0_i32 = arith.constant 0 : i32
    %c0_i32_0 = arith.constant 0 : i32
    return %arg0, %c0_i32 : i32, i32
  }
}

</mosaic_0001>

<llo_original>
// kernel: tpu_custom_call.1
$region0: #{tpu_custom_call.1}
  #allocation0 [shape = 'u32[]', space=smem, size = 0x4, offset = 0x4, fixed_abs, tag = 'smem constant byte address 0x4 - core index']
  #allocation1 [shape = 'u32[144,128]{1,0:T(1,128)}', space=vmem, size = 0x12000, scoped, tag = 'internal scratch']
  %s0 = inlined_call_operand.hbm [shape: f32[16,128], index: 0, kind: input, shape index: {}]
  %s1 = inlined_call_operand.hbm [shape: f32[16,128], index: 1, kind: input, shape index: {}]
  %s2 = inlined_call_operand.hbm [shape: f32[8,128], index: 2, kind: output, shape index: {}]
  %s3 = sld [smem:[#allocation0]]
  $region30: #{tpu_custom_call.1} parent=0
    _
  %s5 = ssub.s32 1, %s3
  %s6 = scalar_select 0, %s5, %s3
  $region1: #{tpu_custom_call.1} parent=0
    #allocation2 [shape = 'u8[8192]{0}', space=vmem, size = 0x2000, scoped, tag = 'input window, operand 0, single buffered']
    #allocation3 [shape = 's32[1]{0}', space=sflag, size = 0x4, scoped, tag = 'scoped memory for tpu_custom_call.1']
    #allocation4 [shape = 's32[1]{0}', space=sflag, size = 0x4, scoped, tag = 'scoped memory for tpu_custom_call.1']
    #allocation5 [shape = 'u8[8192]{0}', space=vmem, size = 0x2000, scoped, tag = 'input window, operand 1, single buffered']
    #allocation6 [shape = 's32[1]{0}', space=sflag, size = 0x4, scoped, tag = 'scoped memory for tpu_custom_call.1']
    #allocation7 [shape = 'u8[4096]{0}', space=vmem, size = 0x1000, scoped, tag = 'output window, operand 0, single buffered']
    %7 = vsyncpa [#allocation3], 0
    %8 = vsyncpa [#allocation6], 0
    %9 = vsyncpa [#allocation4], 0
    // Predicated region
    $region2: #{tpu_custom_call.1} parent=1 // pred_check
      _
    $region3: #{tpu_custom_call.1} parent=1 // pred_check_branch
      %11 = sbr.rel (0) target = $region5
    $region4: #{tpu_custom_call.1} parent=1 // pred_region
      %s12 = sadd.s32 0, 0
      %s13 = smul.u32 2, %s12
      %s15 = ssub.s32 256, 256
      %16 = vsyncadd [#allocation3], %s15
      %s17 = smul.addr %s13, 128
      %s18 = scalar_lea.hbm %s0, %s17
      %s19 = sshll.u32 [#allocation2], 4
      %s20 = int_to_ptr.vmem [resolvable:$true] %s19
      %25 = dma.hbm_to_vmem [thread:$0]  %s18, 256, %s20, [#allocation3], 128, 128, 8
    $region5: #{tpu_custom_call.1} parent=1 // pred_fallthru
      _
    // Predicated region
    $region6: #{tpu_custom_call.1} parent=1 // pred_check
      _
    $region7: #{tpu_custom_call.1} parent=1 // pred_check_branch
      %27 = sbr.rel (0) target = $region9
    $region8: #{tpu_custom_call.1} parent=1 // pred_region
      %s28 = sadd.s32 0, 0
      %s29 = smul.u32 2, %s28
      %s31 = ssub.s32 256, 256
      %32 = vsyncadd [#allocation6], %s31
      %s33 = smul.addr %s29, 128
      %s34 = scalar_lea.hbm %s1, %s33
      %s35 = sshll.u32 [#allocation5], 4
      %s36 = int_to_ptr.vmem [resolvable:$true] %s35
      %41 = dma.hbm_to_vmem [thread:$0]  %s34, 256, %s36, [#allocation6], 128, 128, 8
    $region9: #{tpu_custom_call.1} parent=1 // pred_fallthru
      _
    // Predicated region
    $region10: #{tpu_custom_call.1} parent=1 // pred_check
      _
    $region11: #{tpu_custom_call.1} parent=1 // pred_check_branch
      %43 = sbr.rel (0) target = $region13
    $region12: #{tpu_custom_call.1} parent=1 // pred_region
      %44 = dma.done [#allocation3], 256
    $region13: #{tpu_custom_call.1} parent=1 // pred_fallthru
      _
    // Predicated region
    $region14: #{tpu_custom_call.1} parent=1 // pred_check
      _
    $region15: #{tpu_custom_call.1} parent=1 // pred_check_branch
      %46 = sbr.rel (0) target = $region17
    $region16: #{tpu_custom_call.1} parent=1 // pred_region
      %47 = dma.done [#allocation6], 256
    $region17: #{tpu_custom_call.1} parent=1 // pred_fallthru
      _
    %s48 = sadd.s32 0, 0
    %s49 = smul.u32 2, %s48
    %s50 = sadd.s32 0, 0
    %s51 = smul.u32 2, %s50
    %p52 = scmp.eq.s32.totalorder 0, 0
    // Predicated region
    $region18: #{tpu_custom_call.1} parent=1 // pred_check
      %p53 = pneg %p52
    $region19: #{tpu_custom_call.1} parent=1 // pred_check_branch
      %55 = sbr.rel (%p53) target = $region21
    $region20: #{tpu_custom_call.1} parent=1 // pred_region
      %56 = vst [vmem:[#allocation7] sm:$0xff] 0.0
    $region21: #{tpu_custom_call.1} parent=1 // pred_fallthru
      _
    %v57 = vld [vmem:[#allocation2] sm:$0xff]
    %v58 = vld [vmem:[#allocation2 + $0x8] sm:$0xff]
    %v59 = vld [vmem:[#allocation5] sm:$0xff]
    %v60 = vld [vmem:[#allocation5 + $0x8] sm:$0xff]
    %v61 = vlog2.pop %v57
    %v62 = vmul.f32 %v61, 0.6931472
    %v63 = vlog2.pop %v58
    %v64 = vmul.f32 %v63, 0.6931472
    %v65 = vmax.f32 %v62, -100.0
    %v66 = vmax.f32 %v64, -100.0
    %v67 = vsub.f32 1.0, %v57
    %v68 = vsub.f32 1.0, %v58
    %v69 = vlog2.pop %v67
    %v70 = vmul.f32 %v69, 0.6931472
    %v71 = vlog2.pop %v68
    %v72 = vmul.f32 %v71, 0.6931472
    %v73 = vmax.f32 %v70, -100.0
    %v74 = vmax.f32 %v72, -100.0
    %v75 = vsub.f32 %v65, %v73
    %v76 = vsub.f32 %v66, %v74
    %v77 = vmul.f32 %v59, %v75
    %v78 = vmul.f32 %v60, %v76
    %v79 = vadd.f32 %v77, %v73
    %v80 = vadd.f32 %v78, %v74
    %v81 = vadd.f32 %v79, %v80
    %v82 = vld [vmem:[#allocation7] sm:$0xff]
    %v83 = vadd.f32 %v82, %v81
    %84 = vst [vmem:[#allocation7] sm:$0xff] %v83
    // Predicated region
    $region22: #{tpu_custom_call.1} parent=1 // pred_check
      _
    $region23: #{tpu_custom_call.1} parent=1 // pred_check_branch
      %86 = sbr.rel (0) target = $region25
    $region24: #{tpu_custom_call.1} parent=1 // pred_region
      %s88 = ssub.s32 128, 128
      %89 = vsyncadd [#allocation4], %s88
      %s91 = sshll.u32 [#allocation7], 4
      %s92 = int_to_ptr.vmem [resolvable:$true] %s91
      %94 = dma.vmem_to_hbm [thread:$0]  %s92, 128, %s2, [#allocation4]
    $region25: #{tpu_custom_call.1} parent=1 // pred_fallthru
      _
    // Predicated region
    $region26: #{tpu_custom_call.1} parent=1 // pred_check
      _
    $region27: #{tpu_custom_call.1} parent=1 // pred_check_branch
      %96 = sbr.rel (0) target = $region29
    $region28: #{tpu_custom_call.1} parent=1 // pred_region
      %97 = dma.done [#allocation4], 128
    $region29: #{tpu_custom_call.1} parent=1 // pred_fallthru
      _
    %98 = vsyncpa [#allocation3], 1
    %99 = vsyncpa [#allocation6], 1
    %100 = vsyncpa [#allocation4], 1

</llo_original>
